<compile_context>
chip_gen: v5e
topology: v5e:2x2
jax: 0.10.0
libtpu: 0.0.40
codegen_flags: <defaults>
</compile_context>

<pallas_src>
import functools

import jax
import jax.numpy as jnp
from jax.experimental import pallas as pl
from jax.experimental.pallas import tpu as pltpu


def _round_up(x, m):
    return ((x + m - 1) // m) * m


# ---------------------------------------------------------------------------
# Pallas kernel.
# Packed activation lane layout (width F = 4H + 2R):
#   [ rnn_fw (H) | rnn_bw (H) | cof_fw_in (H) | cof_bw_in (H) | sig_fw (R) | sig_bw (R) ]
# Fused gate weights:
#   Wg_x : (F, 4H)  rows for cof_fw_in / cof_bw_in are zero (they only feed the
#                   cof linear), columns ordered [fw_o | bw_o | fw_h | bw_h]
#   Wg_c : (2H, 4H) cof contribution, rows ordered [cof_fw | cof_bw]
# ---------------------------------------------------------------------------
def _feature_compose_kernel(x_ref, wc_ref, bc_ref, wgx_ref, wgc_ref, bg_ref,
                            out_ref, *, hidden_size):
    H = hidden_size
    f32 = jnp.float32

    x = x_ref[...]
    mm_dtype = x.dtype                               # MXU operand dtype

    # Block-diagonal cof linear on the [cof_fw_in | cof_bw_in] lane slice.
    cof = jnp.tanh(
        jnp.dot(x[:, 2 * H:4 * H], wc_ref[...], preferred_element_type=f32)
        + bc_ref[...])                               # (TN, 2H) = [cof_fw | cof_bw]

    # All 12 gate linears as two matmuls (zero rows where cof_in sits in x).
    g = jax.nn.sigmoid(
        jnp.dot(x, wgx_ref[...], preferred_element_type=f32)
        + jnp.dot(cof.astype(mm_dtype), wgc_ref[...], preferred_element_type=f32)
        + bg_ref[...])                               # (TN, 4H) = [fw_o|bw_o|fw_h|bw_h]

    # Elementwise mix in f32; output layout is already [h_fw | h_bw].
    rnn = x[:, :2 * H].astype(f32)                   # [rnn_fw | rnn_bw]
    out_ref[...] = (g[:, :2 * H] * cof + g[:, 2 * H:] * rnn).astype(out_ref.dtype)


# ---------------------------------------------------------------------------
# Wrapper-side weight fusion into block-structured matrices (built once).
# ---------------------------------------------------------------------------
def _fuse_params(params, hidden_size, sig_feat, matmul_dtype):
    H, R = hidden_size, sig_feat
    f32 = jnp.float32
    zHH = jnp.zeros((H, H), f32)
    zRH = jnp.zeros((R, H), f32)

    # cof linear: block-diagonal (2H, 2H), columns [cof_fw | cof_bw].
    wc = jnp.block([[params["w_fw_cof"], zHH],
                    [zHH, params["w_bw_cof"]]]).astype(matmul_dtype)
    bc = jnp.concatenate([params["b_fw_cof"], params["b_bw_cof"]],
                         axis=1).astype(f32)

    w_hs, w_cof, w_rs, b = (params["w_hs"], params["w_cof"],
                            params["w_rs"], params["b_gate"])
    # Gate weight acting on the packed activation x (rows follow x layout,
    # columns [fw_o | bw_o | fw_h | bw_h]); cof_in rows are zero.
    wgx = jnp.block([
        [w_hs[0], zHH,     w_hs[1], zHH    ],   # rnn_fw
        [zHH,     w_hs[2], zHH,     w_hs[3]],   # rnn_bw
        [zHH,     zHH,     zHH,     zHH    ],   # cof_fw_in (gates don't use it)
        [zHH,     zHH,     zHH,     zHH    ],   # cof_bw_in
        [w_rs[0], zRH,     w_rs[1], zRH    ],   # sig_fw
        [zRH,     w_rs[2], zRH,     w_rs[3]],   # sig_bw
    ]).astype(matmul_dtype)
    # Gate weight acting on cof = [cof_fw | cof_bw].
    wgc = jnp.block([
        [w_cof[0], zHH,      w_cof[1], zHH     ],
        [zHH,      w_cof[2], zHH,      w_cof[3]],
    ]).astype(matmul_dtype)
    bg = jnp.concatenate([b[0], b[2], b[1], b[3]], axis=1).astype(f32)
    return wc, bc, wgx, wgc, bg


# ---------------------------------------------------------------------------
# Wrapper: glue (split / pad / unfold / shift / packing) in plain JAX, hot path
# in Pallas.
# ---------------------------------------------------------------------------
def feature_compose_forward(rnn_hidden, sig_inputs, params, *, hidden_size,
                            sig_dim, context_size,
                            matmul_dtype=jnp.bfloat16, max_tile=1024,
                            vmem_block_budget_bytes=12 * 1024 * 1024):
    B, S, H2 = rnn_hidden.shape
    H = hidden_size
    assert H2 == 2 * H
    ctx = context_size
    R = (ctx + 1) * sig_dim
    F = 4 * H + 2 * R

    rnn_fw = rnn_hidden[..., :H]
    rnn_bw = rnn_hidden[..., H:]

    # --- sliding windows of reliability signals (torch unfold equivalent) ---
    # TODO(synk): build the sig windows in-kernel via halo block reads to avoid
    # the (ctx+1)x duplication of sig bytes staged through HBM.
    zpad = jnp.zeros((B, ctx, sig_dim), dtype=sig_inputs.dtype)
    sig_padded = jnp.concatenate([zpad, sig_inputs, zpad], axis=1)   # (B, S+2c, D)
    base = jnp.arange(S)[:, None] + jnp.arange(ctx + 1)[None, :]     # (S, c+1)
    sig_fw = sig_padded[:, base, :].reshape(B, S, R)                 # prev ctx .. cur
    sig_bw = sig_padded[:, base + ctx, :].reshape(B, S, R)           # cur .. next ctx

    # --- time-shifted rnn states feeding the cof linears ---
    hpad = jnp.zeros((B, 1, H), dtype=rnn_hidden.dtype)
    cof_fw_in = jnp.concatenate([hpad, rnn_fw], axis=1)[:, :-1, :]
    cof_bw_in = jnp.concatenate([rnn_bw, hpad], axis=1)[:, 1:, :]

    # --- pack everything into one lane-dense activation array ---
    packed = jnp.concatenate(
        [rnn_fw, rnn_bw, cof_fw_in, cof_bw_in, sig_fw, sig_bw],
        axis=-1).reshape(B * S, F).astype(matmul_dtype)

    # --- pick a large token tile and pad N up to a tile multiple ---
    N = B * S
    act_isz = jnp.dtype(matmul_dtype).itemsize
    # double-buffered input + output blocks, plus rough f32 intermediates.
    per_token_bytes = (2 * F * act_isz + 2 * (2 * H) * 4
                       + (F + 4 * H + 4 * H) * 4)
    n8 = _round_up(N, 8)
    if n8 <= max_tile and n8 * per_token_bytes <= vmem_block_budget_bytes:
        TN = n8
    else:
        TN = 8
        for t in (1024, 512, 256, 128, 64, 32, 16, 8):
            if t <= max_tile and t * per_token_bytes <= vmem_block_budget_bytes:
                TN = t
                break
    N_pad = _round_up(N, TN)
    if N_pad != N:
        packed = jnp.pad(packed, ((0, N_pad - N), (0, 0)))
    grid = (N_pad // TN,)

    # --- fused / cast weights (biases stay f32) ---
    wc, bc, wgx, wgc, bg = _fuse_params(params, H, R, matmul_dtype)

    # --- explicit VMEM budget (weights may be double-buffered by Pallas too) ---
    w_bytes = ((2 * H * 2 * H + F * 4 * H + 2 * H * 4 * H) * act_isz
               + (2 * H + 4 * H) * 4)
    vmem_limit = int(min(64 * 1024 * 1024,
                         max(32 * 1024 * 1024,
                             2 * (TN * per_token_bytes + 2 * w_bytes))))

    w_spec = lambda a, b: pl.BlockSpec((a, b), lambda i: (0, 0))
    kernel = functools.partial(_feature_compose_kernel, hidden_size=H)

    out = pl.pallas_call(
        kernel,
        out_shape=jax.ShapeDtypeStruct((N_pad, 2 * H), jnp.float32),
        grid=grid,
        in_specs=[
            pl.BlockSpec((TN, F), lambda i: (i, 0)),       # packed activations
            w_spec(2 * H, 2 * H), w_spec(1, 2 * H),        # cof block-diag linear
            w_spec(F, 4 * H),                              # fused gate (x part)
            w_spec(2 * H, 4 * H), w_spec(1, 4 * H),        # fused gate (cof part)
        ],
        out_specs=pl.BlockSpec((TN, 2 * H), lambda i: (i, 0)),
        compiler_params=pltpu.CompilerParams(
            dimension_semantics=("parallel",),
            vmem_limit_bytes=vmem_limit),
    )(packed, wc, bc, wgx, wgc, bg)
    return out[:N].reshape(B, S, 2 * H)


# ---------------------------------------------------------------------------
# Pure-JAX reference (mirrors the PyTorch forward) for correctness checking.
# ---------------------------------------------------------------------------
def feature_compose_reference(rnn_hidden, sig_inputs, params, *, hidden_size,
                              sig_dim, context_size):
    B, S, _ = rnn_hidden.shape
    H, ctx = hidden_size, context_size
    R = (ctx + 1) * sig_dim
    rnn_fw, rnn_bw = rnn_hidden[..., :H], rnn_hidden[..., H:]

    zpad = jnp.zeros((B, ctx, sig_dim), dtype=sig_inputs.dtype)
    sig_padded = jnp.concatenate([zpad, sig_inputs, zpad], axis=1)
    base = jnp.arange(S)[:, None] + jnp.arange(ctx + 1)[None, :]
    sig_fw = sig_padded[:, base, :].reshape(B, S, R)
    sig_bw = sig_padded[:, base + ctx, :].reshape(B, S, R)

    hpad = jnp.zeros((B, 1, H), dtype=rnn_hidden.dtype)
    cof_fw_in = jnp.concatenate([hpad, rnn_fw], axis=1)[:, :-1, :]
    cof_bw_in = jnp.concatenate([rnn_bw, hpad], axis=1)[:, 1:, :]

    cof_fw = jnp.tanh(cof_fw_in @ params["w_fw_cof"] + params["b_fw_cof"])
    cof_bw = jnp.tanh(cof_bw_in @ params["w_bw_cof"] + params["b_bw_cof"])

    def gate(hs, cof, rs, idx):
        g = (hs @ params["w_hs"][idx] + cof @ params["w_cof"][idx]
             + rs @ params["w_rs"][idx] + params["b_gate"][idx])
        return jax.nn.sigmoid(g)

    fw_o, fw_h = gate(rnn_fw, cof_fw, sig_fw, 0), gate(rnn_fw, cof_fw, sig_fw, 1)
    bw_o, bw_h = gate(rnn_bw, cof_bw, sig_bw, 2), gate(rnn_bw, cof_bw, sig_bw, 3)
    h_fw = fw_o * cof_fw + fw_h * rnn_fw
    h_bw = bw_o * cof_bw + bw_h * rnn_bw
    return jnp.concatenate([h_fw, h_bw], axis=-1)


# ---------------------------------------------------------------------------
# Deterministic synthetic parameter init (weights stored as (in, out)).
# Gate biases (hs + cof + rs) are pre-summed since they always add together.
# ---------------------------------------------------------------------------
def init_params(key, hidden_size, sig_dim, context_size):
    H = hidden_size
    R = (context_size + 1) * sig_dim
    keys = jax.random.split(key, 8)
    s = 0.1
    return {
        "w_fw_cof": s * jax.random.normal(keys[0], (H, H), jnp.float32),
        "b_fw_cof": s * jax.random.normal(keys[1], (1, H), jnp.float32),
        "w_bw_cof": s * jax.random.normal(keys[2], (H, H), jnp.float32),
        "b_bw_cof": s * jax.random.normal(keys[3], (1, H), jnp.float32),
        "w_hs":  s * jax.random.normal(keys[4], (4, H, H), jnp.float32),
        "w_cof": s * jax.random.normal(keys[5], (4, H, H), jnp.float32),
        "w_rs":  s * jax.random.normal(keys[6], (4, R, H), jnp.float32),
        "b_gate": s * jax.random.normal(keys[7], (4, 1, H), jnp.float32),
    }


if __name__ == "__main__":
    B, S, H, D, CTX = 2, 8, 32, 8, 4

    key = jax.random.PRNGKey(0)
    k_rnn, k_sig, k_params = jax.random.split(key, 3)
    rnn_hidden = jax.random.normal(k_rnn, (B, S, 2 * H), jnp.float32)
    sig_inputs = jax.random.normal(k_sig, (B, S, D), jnp.float32)
    params = init_params(k_params, H, D, CTX)

    ref = feature_compose_reference(rnn_hidden, sig_inputs, params,
                                    hidden_size=H, sig_dim=D, context_size=CTX)

    fwd = functools.partial(feature_compose_forward,
                            hidden_size=H, sig_dim=D, context_size=CTX)

    # Exact-semantics path (f32 MXU operands): tight check vs reference.
    out_f32 = jax.block_until_ready(
        fwd(rnn_hidden, sig_inputs, params, matmul_dtype=jnp.float32))
    assert out_f32.shape == (B, S, 2 * H)
    assert jnp.allclose(out_f32, ref, atol=1e-4, rtol=1e-4)

    # Fast path (bf16 MXU operands, f32 accumulation/elementwise): loose check.
    out_bf16 = jax.block_until_ready(
        fwd(rnn_hidden, sig_inputs, params, matmul_dtype=jnp.bfloat16))
    assert out_bf16.shape == (B, S, 2 * H)
    assert jnp.allclose(out_bf16, ref, atol=5e-2, rtol=5e-2)

    print("KERNEL_OK")
</pallas_src>

<mosaic_0001>
module attributes {stable_mosaic.version = 11 : i64} {
  func.func @_feature_compose_kernel(%arg0: i32, %arg1: memref<16x208xf32, #tpu.memory_space<vmem>>, %arg2: memref<64x64xf32, #tpu.memory_space<vmem>>, %arg3: memref<1x64xf32, #tpu.memory_space<vmem>>, %arg4: memref<208x128xf32, #tpu.memory_space<vmem>>, %arg5: memref<64x128xf32, #tpu.memory_space<vmem>>, %arg6: memref<1x128xf32, #tpu.memory_space<vmem>>, %arg7: memref<16x64xf32, #tpu.memory_space<vmem>>) attributes {dimension_semantics = [#tpu.dimension_semantics<parallel>], iteration_bounds = array<i64: 1>, scalar_prefetch = 0 : i64, scratch_operands = 0 : i64, tpu.core_type = #tpu.core_type<tc>, window_params = [{transform_indices = @transform_0, window_bounds = array<i64: 16, 208>}, {pipeline_mode = #tpu.pipeline_mode<synchronous>, transform_indices = @transform_1, window_bounds = array<i64: 64, 64>}, {pipeline_mode = #tpu.pipeline_mode<synchronous>, transform_indices = @transform_2, window_bounds = array<i64: 1, 64>}, {pipeline_mode = #tpu.pipeline_mode<synchronous>, transform_indices = @transform_3, window_bounds = array<i64: 208, 128>}, {pipeline_mode = #tpu.pipeline_mode<synchronous>, transform_indices = @transform_4, window_bounds = array<i64: 64, 128>}, {pipeline_mode = #tpu.pipeline_mode<synchronous>, transform_indices = @transform_5, window_bounds = array<i64: 1, 128>}, {transform_indices = @transform_6, window_bounds = array<i64: 16, 64>}]} {
    %c0 = arith.constant 0 : index
    %c0_0 = arith.constant 0 : index
    %0 = vector.load %arg1[%c0, %c0_0] : memref<16x208xf32, #tpu.memory_space<vmem>>, vector<16x208xf32>
    %1 = vector.extract_strided_slice %0 {offsets = [0, 64], sizes = [16, 64], strides = [1, 1]} : vector<16x208xf32> to vector<16x64xf32>
    %c0_1 = arith.constant 0 : index
    %c0_2 = arith.constant 0 : index
    %2 = vector.load %arg2[%c0_1, %c0_2] : memref<64x64xf32, #tpu.memory_space<vmem>>, vector<64x64xf32>
    %cst = arith.constant dense<0.000000e+00> : vector<16x64xf32>
    %3 = tpu.matmul %1, %2, %cst {dimension_numbers = #tpu.dot_dimension_numbers<[1], [0], [0], [1], [0, 0, 1, 1], [], []>} : vector<16x64xf32>, vector<64x64xf32>, vector<16x64xf32> -> vector<16x64xf32>
    %c0_3 = arith.constant 0 : index
    %c0_4 = arith.constant 0 : index
    %4 = vector.load %arg3[%c0_3, %c0_4] : memref<1x64xf32, #tpu.memory_space<vmem>>, vector<1x64xf32>
    %5 = vector.broadcast %4 : vector<1x64xf32> to vector<16x64xf32>
    %6 = arith.addf %3, %5 : vector<16x64xf32>
    %7 = math.tanh %6 : vector<16x64xf32>
    %c0_5 = arith.constant 0 : index
    %c0_6 = arith.constant 0 : index
    %8 = vector.load %arg4[%c0_5, %c0_6] : memref<208x128xf32, #tpu.memory_space<vmem>>, vector<208x128xf32>
    %cst_7 = arith.constant dense<0.000000e+00> : vector<16x128xf32>
    %9 = tpu.matmul %0, %8, %cst_7 {dimension_numbers = #tpu.dot_dimension_numbers<[1], [0], [0], [1], [0, 0, 1, 1], [], []>} : vector<16x208xf32>, vector<208x128xf32>, vector<16x128xf32> -> vector<16x128xf32>
    %c0_8 = arith.constant 0 : index
    %c0_9 = arith.constant 0 : index
    %10 = vector.load %arg5[%c0_8, %c0_9] : memref<64x128xf32, #tpu.memory_space<vmem>>, vector<64x128xf32>
    %cst_10 = arith.constant dense<0.000000e+00> : vector<16x128xf32>
    %11 = tpu.matmul %7, %10, %cst_10 {dimension_numbers = #tpu.dot_dimension_numbers<[1], [0], [0], [1], [0, 0, 1, 1], [], []>} : vector<16x64xf32>, vector<64x128xf32>, vector<16x128xf32> -> vector<16x128xf32>
    %12 = arith.addf %9, %11 : vector<16x128xf32>
    %c0_11 = arith.constant 0 : index
    %c0_12 = arith.constant 0 : index
    %13 = vector.load %arg6[%c0_11, %c0_12] : memref<1x128xf32, #tpu.memory_space<vmem>>, vector<1x128xf32>
    %14 = vector.broadcast %13 : vector<1x128xf32> to vector<16x128xf32>
    %15 = arith.addf %12, %14 : vector<16x128xf32>
    %16 = arith.negf %15 : vector<16x128xf32>
    %17 = math.exp %16 : vector<16x128xf32>
    %cst_13 = arith.constant 1.000000e+00 : f32
    %18 = vector.broadcast %cst_13 : f32 to vector<16x128xf32>
    %19 = arith.addf %18, %17 : vector<16x128xf32>
    %20 = arith.divf %18, %19 : vector<16x128xf32>
    %21 = vector.extract_strided_slice %0 {offsets = [0, 0], sizes = [16, 64], strides = [1, 1]} : vector<16x208xf32> to vector<16x64xf32>
    %22 = vector.extract_strided_slice %20 {offsets = [0, 0], sizes = [16, 64], strides = [1, 1]} : vector<16x128xf32> to vector<16x64xf32>
    %23 = arith.mulf %22, %7 : vector<16x64xf32>
    %24 = vector.extract_strided_slice %20 {offsets = [0, 64], sizes = [16, 64], strides = [1, 1]} : vector<16x128xf32> to vector<16x64xf32>
    %25 = arith.mulf %24, %21 : vector<16x64xf32>
    %26 = arith.addf %23, %25 : vector<16x64xf32>
    %c0_14 = arith.constant 0 : index
    %c0_15 = arith.constant 0 : index
    %27 = vector.load %arg7[%c0_14, %c0_15] : memref<16x64xf32, #tpu.memory_space<vmem>>, vector<16x64xf32>
    tpu.vector_store %arg7[%c0_14, %c0_15], %26 {strides = array<i32>} : memref<16x64xf32, #tpu.memory_space<vmem>>, vector<16x64xf32>,
    return
  }
  func.func @transform_0(%arg0: i32) -> (i32, i32) {
    %c0_i32 = arith.constant 0 : i32
    %c0_i32_0 = arith.constant 0 : i32
    return %arg0, %c0_i32 : i32, i32
  }
  func.func @transform_1(%arg0: i32) -> (i32, i32) {
    %c0_i32 = arith.constant 0 : i32
    %c0_i32_0 = arith.constant 0 : i32
    %c0_i32_1 = arith.constant 0 : i32
    return %c0_i32, %c0_i32_0 : i32, i32
  }
  func.func @transform_2(%arg0: i32) -> (i32, i32) {
    %c0_i32 = arith.constant 0 : i32
    %c0_i32_0 = arith.constant 0 : i32
    %c0_i32_1 = arith.constant 0 : i32
    return %c0_i32, %c0_i32_0 : i32, i32
  }
  func.func @transform_3(%arg0: i32) -> (i32, i32) {
    %c0_i32 = arith.constant 0 : i32
    %c0_i32_0 = arith.constant 0 : i32
    %c0_i32_1 = arith.constant 0 : i32
    return %c0_i32, %c0_i32_0 : i32, i32
  }
  func.func @transform_4(%arg0: i32) -> (i32, i32) {
    %c0_i32 = arith.constant 0 : i32
    %c0_i32_0 = arith.constant 0 : i32
    %c0_i32_1 = arith.constant 0 : i32
    return %c0_i32, %c0_i32_0 : i32, i32
  }
  func.func @transform_5(%arg0: i32) -> (i32, i32) {
    %c0_i32 = arith.constant 0 : i32
    %c0_i32_0 = arith.constant 0 : i32
    %c0_i32_1 = arith.constant 0 : i32
    return %c0_i32, %c0_i32_0 : i32, i32
  }
  func.func @transform_6(%arg0: i32) -> (i32, i32) {
    %c0_i32 = arith.constant 0 : i32
    %c0_i32_0 = arith.constant 0 : i32
    return %arg0, %c0_i32 : i32, i32
  }
}

</mosaic_0001>

<llo_original>
// kernel: tpu_custom_call.1
$region0: #{tpu_custom_call.1}
  #allocation0 [shape = 'u32[]', space=smem, size = 0x4, offset = 0x4, fixed_abs, tag = 'smem constant byte address 0x4 - core index']
  #allocation1 [shape = 'u32[72,128]{1,0:T(1,128)}', space=vmem, size = 0x9000, scoped, tag = 'internal scratch']
  %s0 = inlined_call_operand.hbm [shape: f32[16,208], index: 0, kind: input, shape index: {}]
  %s1 = inlined_call_operand.hbm [shape: f32[64,64], index: 1, kind: input, shape index: {}]
  %s2 = inlined_call_operand.vmem [shape: f32[1,64], index: 2, kind: input, shape index: {}]
  %s3 = inlined_call_operand.hbm [shape: f32[208,128], index: 3, kind: input, shape index: {}]
  %s4 = inlined_call_operand.hbm [shape: f32[64,128], index: 4, kind: input, shape index: {}]
  %s5 = inlined_call_operand.vmem [shape: f32[1,128], index: 5, kind: input, shape index: {}]
  %s6 = inlined_call_operand.hbm [shape: f32[16,64], index: 6, kind: output, shape index: {}]
  %s7 = sld [smem:[#allocation0]]
  $region50: #{tpu_custom_call.1} parent=0
    _
  %s9 = ssub.s32 1, %s7
  %s10 = scalar_select 0, %s9, %s7
  $region1: #{tpu_custom_call.1} parent=0
    #allocation2 [shape = 'u8[16384]{0}', space=vmem, size = 0x4000, scoped, tag = 'input window, operand 0, single buffered']
    #allocation3 [shape = 's32[1]{0}', space=sflag, size = 0x4, scoped, tag = 'scoped memory for tpu_custom_call.1']
    #allocation4 [shape = 's32[1]{0}', space=sflag, size = 0x4, scoped, tag = 'scoped memory for tpu_custom_call.1']
    #allocation5 [shape = 'u8[32768]{0}', space=vmem, size = 0x8000, scoped, tag = 'input window, operand 1, single buffered']
    #allocation6 [shape = 's32[1]{0}', space=sflag, size = 0x4, scoped, tag = 'scoped memory for tpu_custom_call.1']
    #allocation7 [shape = 'u8[106496]{0}', space=vmem, size = 0x1a000, scoped, tag = 'input window, operand 3, single buffered']
    #allocation8 [shape = 'u8[32768]{0}', space=vmem, size = 0x8000, scoped, tag = 'input window, operand 4, single buffered']
    #allocation9 [shape = 's32[1]{0}', space=sflag, size = 0x4, scoped, tag = 'scoped memory for tpu_custom_call.1']
    #allocation10 [shape = 'u8[8192]{0}', space=vmem, size = 0x2000, scoped, tag = 'output window, operand 0, single buffered']
    %11 = vsyncpa [#allocation3], 0
    %12 = vsyncpa [#allocation6], 0
    %13 = vsyncpa [#allocation9], 0
    %14 = vsyncpa [#allocation4], 0
    // Predicated region
    $region2: #{tpu_custom_call.1} parent=1 // pred_check
      _
    $region3: #{tpu_custom_call.1} parent=1 // pred_check_branch
      %16 = sbr.rel (0) target = $region5
    $region4: #{tpu_custom_call.1} parent=1 // pred_region
      %18 = vsyncadd [#allocation3], 0
      %s19 = sshll.u32 %s0, 4
      %s20 = int_to_ptr.hbm [resolvable:$true] %s19
      %s21 = sshll.u32 [#allocation2], 4
      %s22 = int_to_ptr.vmem [resolvable:$true] %s21
      %27 = dma.hbm_to_vmem [thread:$0]  %s20, 512, %s22, [#allocation3], 256, 256, 16
    $region5: #{tpu_custom_call.1} parent=1 // pred_fallthru
      _
    // Predicated region
    $region6: #{tpu_custom_call.1} parent=1 // pred_check
      _
    $region7: #{tpu_custom_call.1} parent=1 // pred_check_branch
      %29 = sbr.rel (0) target = $region9
    $region8: #{tpu_custom_call.1} parent=1 // pred_region
      %31 = vsyncadd [#allocation6], 0
      %s32 = sshll.u32 %s1, 4
      %s33 = int_to_ptr.hbm [resolvable:$true] %s32
      %s34 = sshll.u32 [#allocation5], 4
      %s35 = int_to_ptr.vmem [resolvable:$true] %s34
      %40 = dma.hbm_to_vmem [thread:$0]  %s33, 1024, %s35, [#allocation6], 128, 128, 8
    $region9: #{tpu_custom_call.1} parent=1 // pred_fallthru
      _
    // Predicated region
    $region10: #{tpu_custom_call.1} parent=1 // pred_check
      _
    $region11: #{tpu_custom_call.1} parent=1 // pred_check_branch
      %42 = sbr.rel (0) target = $region13
    $region12: #{tpu_custom_call.1} parent=1 // pred_region
      _
    $region13: #{tpu_custom_call.1} parent=1 // pred_fallthru
      _
    // Predicated region
    $region14: #{tpu_custom_call.1} parent=1 // pred_check
      _
    $region15: #{tpu_custom_call.1} parent=1 // pred_check_branch
      %44 = sbr.rel (0) target = $region17
    $region16: #{tpu_custom_call.1} parent=1 // pred_region
      %46 = vsyncadd [#allocation6], 0
      %s47 = sshll.u32 %s3, 4
      %s48 = int_to_ptr.hbm [resolvable:$true] %s47
      %s49 = sshll.u32 [#allocation7], 4
      %s50 = int_to_ptr.vmem [resolvable:$true] %s49
      %55 = dma.hbm_to_vmem [thread:$0]  %s48, 3328, %s50, [#allocation6], 128, 128, 8
    $region17: #{tpu_custom_call.1} parent=1 // pred_fallthru
      _
    // Predicated region
    $region18: #{tpu_custom_call.1} parent=1 // pred_check
      _
    $region19: #{tpu_custom_call.1} parent=1 // pred_check_branch
      %57 = sbr.rel (0) target = $region21
    $region20: #{tpu_custom_call.1} parent=1 // pred_region
      %59 = vsyncadd [#allocation9], 0
      %s60 = sshll.u32 %s4, 4
      %s61 = int_to_ptr.hbm [resolvable:$true] %s60
      %s62 = sshll.u32 [#allocation8], 4
      %s63 = int_to_ptr.vmem [resolvable:$true] %s62
      %68 = dma.hbm_to_vmem [thread:$0]  %s61, 1024, %s63, [#allocation9], 128, 128, 8
    $region21: #{tpu_custom_call.1} parent=1 // pred_fallthru
      _
    // Predicated region
    $region22: #{tpu_custom_call.1} parent=1 // pred_check
      _
    $region23: #{tpu_custom_call.1} parent=1 // pred_check_branch
      %70 = sbr.rel (0) target = $region25
    $region24: #{tpu_custom_call.1} parent=1 // pred_region
      _
    $region25: #{tpu_custom_call.1} parent=1 // pred_fallthru
      _
    // Predicated region
    $region26: #{tpu_custom_call.1} parent=1 // pred_check
      _
    $region27: #{tpu_custom_call.1} parent=1 // pred_check_branch
      %72 = sbr.rel (0) target = $region29
    $region28: #{tpu_custom_call.1} parent=1 // pred_region
      %74 = dma.done [#allocation3], 512
    $region29: #{tpu_custom_call.1} parent=1 // pred_fallthru
      _
    // Predicated region
    $region30: #{tpu_custom_call.1} parent=1 // pred_check
      _
    $region31: #{tpu_custom_call.1} parent=1 // pred_check_branch
      %76 = sbr.rel (0) target = $region33
    $region32: #{tpu_custom_call.1} parent=1 // pred_region
      %78 = dma.done [#allocation6], 1024
    $region33: #{tpu_custom_call.1} parent=1 // pred_fallthru
      _
    // Predicated region
    $region34: #{tpu_custom_call.1} parent=1 // pred_check
      _
    $region35: #{tpu_custom_call.1} parent=1 // pred_check_branch
      %80 = sbr.rel (0) target = $region37
    $region36: #{tpu_custom_call.1} parent=1 // pred_region
      %82 = dma.done [#allocation6], 3328
    $region37: #{tpu_custom_call.1} parent=1 // pred_fallthru
      _
    // Predicated region
    $region38: #{tpu_custom_call.1} parent=1 // pred_check
      _
    $region39: #{tpu_custom_call.1} parent=1 // pred_check_branch
      %84 = sbr.rel (0) target = $region41
    $region40: #{tpu_custom_call.1} parent=1 // pred_region
      %86 = dma.done [#allocation9], 1024
    $region41: #{tpu_custom_call.1} parent=1 // pred_fallthru
      _
    %v87 = vld [vmem:[#allocation2] sm:$0xff]
    %v88 = vld [vmem:[#allocation2 + $0x8] sm:$0xff]
    %v89 = vld [vmem:[#allocation2 + $0x10] sm:$0xff]
    %v90 = vld [vmem:[#allocation2 + $0x18] sm:$0xff]
    %v91 = vld [vmem:[#allocation5] sm:$0xff]
    %v92 = vld [vmem:[#allocation5 + $0x8] sm:$0xff]
    %v93 = vld [vmem:[#allocation5 + $0x10] sm:$0xff]
    %v94 = vld [vmem:[#allocation5 + $0x18] sm:$0xff]
    %v95 = vld [vmem:[#allocation5 + $0x20] sm:$0xff]
    %v96 = vld [vmem:[#allocation5 + $0x28] sm:$0xff]
    %v97 = vld [vmem:[#allocation5 + $0x30] sm:$0xff]
    %v98 = vld [vmem:[#allocation5 + $0x38] sm:$0xff]
    %v99 = vld [vmem:[%s2] sm:$0x1]
    %v101 = vperm.slane %v99, 0
    %105 = vrot.lane.b32.xlu0 %v87, 64
    %v106 = vpop.permute.xlu0 %105
    %107 = vrot.lane.b32.xlu0 %v89, 64
    %v108 = vpop.permute.xlu0 %107
    %vm109 = vcmask 523264
    %v110 = vsel %vm109, %v106, 0
    %v112 = vsel %vm109, %v108, 0
    %114 = vmatpush.msra.mxu0 0.0
    %115 = vmatpush.msra.mxu0 0.0
    %116 = vmatpush.msra.mxu0 0.0
    %117 = vmatpush.msra.mxu0 0.0
    %118 = vmatpush.msra.mxu0 0.0
    %119 = vmatpush.msra.mxu0 0.0
    %120 = vmatpush.msra.mxu0 0.0
    %121 = vmatpush.msra.mxu0 0.0
    %122 = vmatpush.msra.mxu0 %v98
    %123 = vmatpush.msra.mxu0 %v97
    %124 = vmatpush.msra.mxu0 %v96
    %125 = vmatpush.msra.mxu0 %v95
    %126 = vmatpush.msra.mxu0 %v94
    %127 = vmatpush.msra.mxu0 %v93
    %128 = vmatpush.msra.mxu0 %v92
    %129 = vmatpush.msra.mxu0 %v91
    %130 = vmatmul.f32.gmra.mxu0 %v110
    %v131 = vpop.f32.mrf.mxu0
    %v132 = vadd.f32 %v101, %v131
    %133 = vmatmul.f32.gmra.mxu0 %v112
    %v134 = vpop.f32.mrf.mxu0
    %v135 = vadd.f32 %v101, %v134
    %136 = vdwg.mxu0
    %v137 = vtanh.pop %v132
    %v138 = vtanh.pop %v135
    %v139 = vld [vmem:[#allocation7] sm:$0xff]
    %v140 = vld [vmem:[#allocation7 + $0x8] sm:$0xff]
    %v141 = vld [vmem:[#allocation7 + $0x10] sm:$0xff]
    %v142 = vld [vmem:[#allocation7 + $0x18] sm:$0xff]
    %v143 = vld [vmem:[#allocation7 + $0x20] sm:$0xff]
    %v144 = vld [vmem:[#allocation7 + $0x28] sm:$0xff]
    %v145 = vld [vmem:[#allocation7 + $0x30] sm:$0xff]
    %v146 = vld [vmem:[#allocation7 + $0x38] sm:$0xff]
    %v147 = vld [vmem:[#allocation7 + $0x40] sm:$0xff]
    %v148 = vld [vmem:[#allocation7 + $0x48] sm:$0xff]
    %v149 = vld [vmem:[#allocation7 + $0x50] sm:$0xff]
    %v150 = vld [vmem:[#allocation7 + $0x58] sm:$0xff]
    %v151 = vld [vmem:[#allocation7 + $0x60] sm:$0xff]
    %v152 = vld [vmem:[#allocation7 + $0x68] sm:$0xff]
    %v153 = vld [vmem:[#allocation7 + $0x70] sm:$0xff]
    %v154 = vld [vmem:[#allocation7 + $0x78] sm:$0xff]
    %v155 = vld [vmem:[#allocation7 + $0x80] sm:$0xff]
    %v156 = vld [vmem:[#allocation7 + $0x88] sm:$0xff]
    %v157 = vld [vmem:[#allocation7 + $0x90] sm:$0xff]
    %v158 = vld [vmem:[#allocation7 + $0x98] sm:$0xff]
    %v159 = vld [vmem:[#allocation7 + $0xa0] sm:$0xff]
    %v160 = vld [vmem:[#allocation7 + $0xa8] sm:$0xff]
    %v161 = vld [vmem:[#allocation7 + $0xb0] sm:$0xff]
    %v162 = vld [vmem:[#allocation7 + $0xb8] sm:$0xff]
    %v163 = vld [vmem:[#allocation7 + $0xc0] sm:$0xff]
    %v164 = vld [vmem:[#allocation7 + $0xc8] sm:$0xff]
    %v165 = vld [vmem:[#allocation8] sm:$0xff]
    %v166 = vld [vmem:[#allocation8 + $0x8] sm:$0xff]
    %v167 = vld [vmem:[#allocation8 + $0x10] sm:$0xff]
    %v168 = vld [vmem:[#allocation8 + $0x18] sm:$0xff]
    %v169 = vld [vmem:[#allocation8 + $0x20] sm:$0xff]
    %v170 = vld [vmem:[#allocation8 + $0x28] sm:$0xff]
    %v171 = vld [vmem:[#allocation8 + $0x30] sm:$0xff]
    %v172 = vld [vmem:[#allocation8 + $0x38] sm:$0xff]
    %v174 = vsel %vm109, %v137, 0
    %v177 = vsel %vm109, %v138, 0
    %179 = vmatpush.msra.mxu0 0.0
    %180 = vmatpush.msra.mxu0 0.0
    %181 = vmatpush.msra.mxu0 0.0
    %182 = vmatpush.msra.mxu0 0.0
    %183 = vmatpush.msra.mxu0 0.0
    %184 = vmatpush.msra.mxu0 0.0
    %185 = vmatpush.msra.mxu0 0.0
    %186 = vmatpush.msra.mxu0 0.0
    %187 = vmatpush.msra.mxu0 %v172
    %188 = vmatpush.msra.mxu0 %v171
    %189 = vmatpush.msra.mxu0 %v170
    %190 = vmatpush.msra.mxu0 %v169
    %191 = vmatpush.msra.mxu0 %v168
    %192 = vmatpush.msra.mxu0 %v167
    %193 = vmatpush.msra.mxu0 %v166
    %194 = vmatpush.msra.mxu0 %v165
    %195 = vmatmul.f32.gmra.mxu0 %v174
    %v196 = vpop.f32.mrf.mxu0
    %v197 = vadd.f32 0.0, %v196
    %198 = vmatmul.f32.gmra.mxu0 %v177
    %v199 = vpop.f32.mrf.mxu0
    %v200 = vadd.f32 0.0, %v199
    %201 = vdwg.mxu0
    %vm202 = vcmask 654336
    %v204 = vsel %vm202, %v88, 0
    %v207 = vsel %vm202, %v90, 0
    %209 = vmatpush.msra.mxu0 %v154
    %210 = vmatpush.msra.mxu0 %v153
    %211 = vmatpush.msra.mxu0 %v152
    %212 = vmatpush.msra.mxu0 %v151
    %213 = vmatpush.msra.mxu0 %v150
    %214 = vmatpush.msra.mxu0 %v149
    %215 = vmatpush.msra.mxu0 %v148
    %216 = vmatpush.msra.mxu0 %v147
    %217 = vmatpush.msra.mxu0 %v146
    %218 = vmatpush.msra.mxu0 %v145
    %219 = vmatpush.msra.mxu0 %v144
    %220 = vmatpush.msra.mxu0 %v143
    %221 = vmatpush.msra.mxu0 %v142
    %222 = vmatpush.msra.mxu0 %v141
    %223 = vmatpush.msra.mxu0 %v140
    %224 = vmatpush.msra.mxu0 %v139
    %225 = vmatmul.f32.gmra.mxu0 %v87
    %v226 = vpop.f32.mrf.mxu0
    %v227 = vadd.f32 %v197, %v226
    %228 = vmatmul.f32.gmra.mxu0 %v89
    %v229 = vpop.f32.mrf.mxu0
    %v230 = vadd.f32 %v200, %v229
    %231 = vdwg.mxu0
    %232 = vmatpush.msra.mxu0 0.0
    %233 = vmatpush.msra.mxu0 0.0
    %234 = vmatpush.msra.mxu0 0.0
    %235 = vmatpush.msra.mxu0 0.0
    %236 = vmatpush.msra.mxu0 0.0
    %237 = vmatpush.msra.mxu0 0.0
    %238 = vmatpush.msra.mxu0 %v164
    %239 = vmatpush.msra.mxu0 %v163
    %240 = vmatpush.msra.mxu0 %v162
    %241 = vmatpush.msra.mxu0 %v161
    %242 = vmatpush.msra.mxu0 %v160
    %243 = vmatpush.msra.mxu0 %v159
    %244 = vmatpush.msra.mxu0 %v158
    %245 = vmatpush.msra.mxu0 %v157
    %246 = vmatpush.msra.mxu0 %v156
    %247 = vmatpush.msra.mxu0 %v155
    %248 = vmatmul.f32.gmra.mxu0 %v204
    %v249 = vpop.f32.mrf.mxu0
    %v250 = vadd.f32 %v227, %v249
    %251 = vmatmul.f32.gmra.mxu0 %v207
    %v252 = vpop.f32.mrf.mxu0
    %v253 = vadd.f32 %v230, %v252
    %254 = vdwg.mxu0
    %v255 = vld [vmem:[%s5] sm:$0x1]
    %v257 = vperm.slane %v255, 0
    %v259 = vadd.f32 %v250, %v257
    %v260 = vadd.f32 %v253, %v257
    %v261 = vxor.u32 %v259, 2147483648
    %v262 = vxor.u32 %v260, 2147483648
    %v263 = vmul.f32 %v261, 1.442695
    %v264 = vpow.pop %v263
    %v265 = vmul.f32 %v262, 1.442695
    %v266 = vpow.pop %v265
    %v267 = vadd.f32 %v264, 1.0
    %v268 = vadd.f32 %v266, 1.0
    %v269 = vrcp.pop %v267
    %v270 = vmul.f32 %v267, %v269
    %v271 = vsub.f32 1.0, %v270
    %v272 = vmul.f32 %v269, %v271
    %v273 = vadd.f32 %v269, %v272
    %vm274 = vweird.f32 %v267
    %vm275 = vweird.f32 %v269
    %vm276 = vmor %vm274, %vm275
    %v277 = vsel %vm276, %v269, %v273
    %v278 = vand.u32 2147483647, %v267
    %vm279 = vcmp.eq.f32.partialorder %v278, 8.507059e+37
    %v280 = vand.u32 %v267, 2147483648
    %v281 = vor.u32 1.1754944e-38, %v280
    %v282 = vsel %vm279, %v281, %v277
    %v283 = vmul.f32 1.0, %v282
    %v284 = vrcp.pop %v268
    %v285 = vmul.f32 %v268, %v284
    %v286 = vsub.f32 1.0, %v285
    %v287 = vmul.f32 %v284, %v286
    %v288 = vadd.f32 %v284, %v287
    %vm289 = vweird.f32 %v268
    %vm290 = vweird.f32 %v284
    %vm291 = vmor %vm289, %vm290
    %v292 = vsel %vm291, %v284, %v288
    %v293 = vand.u32 2147483647, %v268
    %vm294 = vcmp.eq.f32.partialorder %v293, 8.507059e+37
    %v295 = vand.u32 %v268, 2147483648
    %v296 = vor.u32 1.1754944e-38, %v295
    %v297 = vsel %vm294, %v296, %v292
    %v298 = vmul.f32 1.0, %v297
    %v299 = vmul.f32 %v283, %v137
    %v300 = vmul.f32 %v298, %v138
    %v303 = vmul.f32 %v283, %v106
    %v304 = vmul.f32 %v298, %v108
    %307 = vrot.lane.b32.xlu0 %v303, 64
    %v308 = vpop.permute.xlu0 %307
    %309 = vrot.lane.b32.xlu0 %v304, 64
    %v310 = vpop.permute.xlu0 %309
    %v313 = vadd.f32 %v299, %v308
    %v314 = vadd.f32 %v300, %v310
    %315 = vst.msk [vmem:[#allocation10] sm:$0xff] %vm109, %v313
    %316 = vst.msk [vmem:[#allocation10 + $0x8] sm:$0xff] %vm109, %v314
    // Predicated region
    $region42: #{tpu_custom_call.1} parent=1 // pred_check
      _
    $region43: #{tpu_custom_call.1} parent=1 // pred_check_branch
      %318 = sbr.rel (0) target = $region45
    $region44: #{tpu_custom_call.1} parent=1 // pred_region
      %320 = vsyncadd [#allocation4], 0
      %s321 = sshll.u32 [#allocation10], 4
      %s322 = int_to_ptr.vmem [resolvable:$true] %s321
      %s323 = sshll.u32 %s6, 4
      %s324 = int_to_ptr.hbm [resolvable:$true] %s323
      %329 = dma.vmem_to_hbm [thread:$0]  %s322, 256, %s324, [#allocation4], 128, 128, 8
    $region45: #{tpu_custom_call.1} parent=1 // pred_fallthru
      _
    // Predicated region
    $region46: #{tpu_custom_call.1} parent=1 // pred_check
      _
    $region47: #{tpu_custom_call.1} parent=1 // pred_check_branch
      %331 = sbr.rel (0) target = $region49
    $region48: #{tpu_custom_call.1} parent=1 // pred_region
      %333 = dma.done [#allocation4], 256
    $region49: #{tpu_custom_call.1} parent=1 // pred_fallthru
      _
    %334 = vsyncpa [#allocation3], 1
    %335 = vsyncpa [#allocation6], 1
    %336 = vsyncpa [#allocation9], 1
    %337 = vsyncpa [#allocation4], 1

</llo_original>
